<compile_context>
chip_gen: v7x
topology: tpu7x:2x2x1
jax: 0.10.0
libtpu: 0.0.40
codegen_flags: <defaults>
</compile_context>

<pallas_src>
import functools
import math

import jax
import jax.numpy as jnp
from jax.experimental import pallas as pl
from jax.experimental.pallas import tpu as pltpu


def _softplus(x):
    # PyTorch nn.Softplus(beta=1, threshold=20)
    return jnp.where(x > 20.0, x, jnp.log1p(jnp.exp(jnp.minimum(x, 20.0))))


def gaussian_lstm_kernel(
    x_ref, eps_ref, init_ref,          # (T,B,I), (T,B,O), (B, 2LH)
    embed_w_ref, embed_b_ref,          # (I, H), (1, H)
    lstm_w_ref, lstm_b_ref,            # (L, 2H, 4H), (L, 1, 4H)
    head_w_ref, head_b_ref,            # (H, 2O), (1, 2O)
    out_ref,                           # (T, 3, B, O)  planes: z, mu, std
    state_ref,                         # (B, (2L+1)*H) packed state slab
    *, seq_len, n_layers, hidden_size, output_size):
    T, L, H, O = seq_len, n_layers, hidden_size, output_size

    # One-time init of the VMEM-resident packed state slab.
    # Lane layout: [in_0 | h_0 .. h_{L-1} | c_0 .. c_{L-1}]
    state_ref[:, H:] = init_ref[...]

    @pl.loop(0, T)
    def _step(t):
        # embed: Linear(input_size, hidden_size)  -- (B,I)@(I,H)
        emb = jnp.dot(x_ref[t], embed_w_ref[...],
                      preferred_element_type=jnp.float32) + embed_b_ref[...]
        state_ref[:, 0:H] = emb          # becomes layer-0 input section

        h_in = emb
        # stacked LSTMCell layers (n_layers is compile-time static)
        for l in range(L):
            # [input_l | h_l] is one contiguous 2H-lane window of the slab.
            xh = state_ref[:, l * H:(l + 2) * H]                   # (B, 2H)
            gates = jnp.dot(xh, lstm_w_ref[l],
                            preferred_element_type=jnp.float32) + lstm_b_ref[l]
            # Two full-vreg EUP passes over (B, 4H); sigmoid via EUP tanh.
            sig_all = 0.5 * jnp.tanh(0.5 * gates) + 0.5            # i/f/o lanes
            tanh_all = jnp.tanh(gates)                             # g lanes
            # PyTorch LSTMCell gate order: i, f, g, o
            i_g = sig_all[:, 0 * H:1 * H]
            f_g = sig_all[:, 1 * H:2 * H]
            g_g = tanh_all[:, 2 * H:3 * H]
            o_g = sig_all[:, 3 * H:4 * H]

            c_off = (L + 1 + l) * H
            c_prev = state_ref[:, c_off:c_off + H]
            c_new = f_g * c_prev + i_g * g_g
            h_new = o_g * jnp.tanh(c_new)

            # lane-slice stores back into the packed slab (no concatenate)
            state_ref[:, (l + 1) * H:(l + 2) * H] = h_new
            state_ref[:, c_off:c_off + H] = c_new
            h_in = h_new

        # fused mu / std heads: (B,H)@(H,2O)
        heads = jnp.dot(h_in, head_w_ref[...],
                        preferred_element_type=jnp.float32) + head_b_ref[...]
        mu = heads[:, 0:O]
        stdp = _softplus(heads[:, O:2 * O])

        # reparameterize(mu, stdp): z = eps * exp(0.5 * stdp) + mu
        z = eps_ref[t] * jnp.exp(0.5 * stdp) + mu

        out_ref[t, 0] = z.astype(out_ref.dtype)
        out_ref[t, 1] = mu.astype(out_ref.dtype)
        out_ref[t, 2] = stdp.astype(out_ref.dtype)


def pack_params(p):
    """Layout plumbing (zero runtime cost): transpose to (in, out), fuse
    ih/hh weights & biases, fuse mu/std heads."""
    lstm_w = jnp.concatenate(
        [jnp.transpose(p["w_ih"], (0, 2, 1)),
         jnp.transpose(p["w_hh"], (0, 2, 1))], axis=1)              # (L, 2H, 4H)
    lstm_b = p["b_ih"] + p["b_hh"]                                   # (L, 1, 4H)
    head_w = jnp.concatenate([p["mu_w"].T, p["std_w"].T], axis=1)    # (H, 2O)
    head_b = jnp.concatenate([p["mu_b"], p["std_b"]], axis=1)        # (1, 2O)
    return {
        "embed_w": jnp.asarray(p["embed_w"]).T,                      # (I, H)
        "embed_b": p["embed_b"],                                     # (1, H)
        "lstm_w": lstm_w, "lstm_b": lstm_b,
        "head_w": head_w, "head_b": head_b,
    }


def gaussian_lstm_forward(x_seq, eps_seq, packed, hidden, *, input_size,
                          output_size, hidden_size, n_layers):
    """Run the module forward over a whole sequence in ONE pallas_call.

    x_seq:   (T, ..., input_size)  -> flattened per step to (B, input_size)
    eps_seq: (T, B, output_size)   N(0,1) samples for reparameterize
    hidden:  (h0, c0), each (n_layers, B, hidden_size)
    Returns (z, mu, stdp) each (T, B, output_size) and (new_h, new_c).
    """
    T = x_seq.shape[0]
    x2d = x_seq.reshape(T, -1, input_size).astype(jnp.float32)
    B = x2d.shape[1]
    H, O, L = hidden_size, output_size, n_layers
    h0, c0 = hidden

    # pack initial state to match the slab's [h_0..h_{L-1} | c_0..c_{L-1}] lanes
    h_flat = jnp.transpose(h0, (1, 0, 2)).reshape(B, L * H)
    c_flat = jnp.transpose(c0, (1, 0, 2)).reshape(B, L * H)
    init_state = jnp.concatenate([h_flat, c_flat], axis=-1)          # (B, 2LH)

    vmem = pl.BlockSpec(memory_space=pltpu.MemorySpace.VMEM)
    out_seq, slab = pl.pallas_call(
        functools.partial(gaussian_lstm_kernel, seq_len=T, n_layers=L,
                          hidden_size=H, output_size=O),
        out_shape=(
            jax.ShapeDtypeStruct((T, 3, B, O), jnp.float32),
            jax.ShapeDtypeStruct((B, (2 * L + 1) * H), jnp.float32),
        ),
        in_specs=[vmem] * 9,
        out_specs=(vmem, vmem),
    )(x2d, eps_seq.astype(jnp.float32), init_state,
      packed["embed_w"], packed["embed_b"],
      packed["lstm_w"], packed["lstm_b"],
      packed["head_w"], packed["head_b"])

    z, mu, stdp = out_seq[:, 0], out_seq[:, 1], out_seq[:, 2]
    hc = slab[:, H:]                                                  # (B, 2LH)
    new_h = hc[:, :L * H].reshape(B, L, H).transpose(1, 0, 2)
    new_c = hc[:, L * H:].reshape(B, L, H).transpose(1, 0, 2)
    return z, mu, stdp, new_h, new_c


def init_params(key, input_size, output_size, hidden_size, n_layers):
    """PyTorch-style U(-1/sqrt(fan_in), 1/sqrt(fan_in)) init (PyTorch layout)."""
    ks = list(jax.random.split(key, 12))

    def unif(k, shape, fan_in):
        bound = 1.0 / math.sqrt(fan_in)
        return jax.random.uniform(k, shape, jnp.float32, -bound, bound)

    H, O, I = hidden_size, output_size, input_size
    p = {}
    p["embed_w"] = unif(ks[0], (H, I), I)
    p["embed_b"] = unif(ks[1], (1, H), I)
    p["w_ih"] = unif(ks[2], (n_layers, 4 * H, H), H)
    p["b_ih"] = unif(ks[3], (n_layers, 1, 4 * H), H)
    p["w_hh"] = unif(ks[4], (n_layers, 4 * H, H), H)
    p["b_hh"] = unif(ks[5], (n_layers, 1, 4 * H), H)
    p["mu_w"] = unif(ks[6], (O, H), H)
    p["mu_b"] = unif(ks[7], (1, O), H)
    p["std_w"] = unif(ks[8], (O, H), H)
    p["std_b"] = unif(ks[9], (1, O), H)
    return p


def reference_forward(x_seq, eps_seq, params, hidden, *, input_size):
    """Pure-JAX reference mirroring the PyTorch module called once per step."""
    T = x_seq.shape[0]
    x = x_seq.reshape(T, -1, input_size).astype(jnp.float32)
    h, c = hidden
    n_layers, _, H = h.shape
    zs, mus, stds = [], [], []
    for t in range(T):
        h_in = x[t] @ params["embed_w"].T + params["embed_b"]
        for l in range(n_layers):
            gates = (h_in @ params["w_ih"][l].T + params["b_ih"][l]
                     + h[l] @ params["w_hh"][l].T + params["b_hh"][l])
            i_g = jax.nn.sigmoid(gates[:, 0 * H:1 * H])
            f_g = jax.nn.sigmoid(gates[:, 1 * H:2 * H])
            g_g = jnp.tanh(gates[:, 2 * H:3 * H])
            o_g = jax.nn.sigmoid(gates[:, 3 * H:4 * H])
            c_new = f_g * c[l] + i_g * g_g
            h_new = o_g * jnp.tanh(c_new)
            h = h.at[l].set(h_new)
            c = c.at[l].set(c_new)
            h_in = h_new
        mu = h_in @ params["mu_w"].T + params["mu_b"]
        stdp = jax.nn.softplus(h_in @ params["std_w"].T + params["std_b"])
        z = eps_seq[t] * jnp.exp(0.5 * stdp) + mu
        zs.append(z); mus.append(mu); stds.append(stdp)
    return jnp.stack(zs), jnp.stack(mus), jnp.stack(stds), h, c


if __name__ == "__main__":
    # small shapes consistent with the module
    seq_len = 8
    batch_size = 8
    input_size = 16
    hidden_size = 32
    output_size = 16
    n_layers = 2

    key = jax.random.PRNGKey(0)
    k_param, k_x, k_eps = jax.random.split(key, 3)

    params = init_params(k_param, input_size, output_size, hidden_size, n_layers)
    packed = pack_params(params)

    x = jax.random.normal(k_x, (seq_len, batch_size, input_size), jnp.float32)
    # eps is the N(0,1) sample used by reparameterize (drawn as glue, used in-kernel)
    eps = jax.random.normal(k_eps, (seq_len, batch_size, output_size), jnp.float32)

    # init_hidden(): zeros for every layer
    h0 = jnp.zeros((n_layers, batch_size, hidden_size), jnp.float32)
    c0 = jnp.zeros((n_layers, batch_size, hidden_size), jnp.float32)

    z, mu, stdp, h_new, c_new = gaussian_lstm_forward(
        x, eps, packed, (h0, c0),
        input_size=input_size, output_size=output_size,
        hidden_size=hidden_size, n_layers=n_layers)
    jax.block_until_ready((z, mu, stdp, h_new, c_new))

    # sanity check against pure-JAX reference (loose tol for MXU f32 paths)
    z_r, mu_r, std_r, h_r, c_r = reference_forward(
        x, eps, params, (h0, c0), input_size=input_size)
    assert jnp.allclose(z, z_r, rtol=1e-2, atol=1e-2)
    assert jnp.allclose(mu, mu_r, rtol=1e-2, atol=1e-2)
    assert jnp.allclose(stdp, std_r, rtol=1e-2, atol=1e-2)
    assert jnp.allclose(h_new, h_r, rtol=1e-2, atol=1e-2)
    assert jnp.allclose(c_new, c_r, rtol=1e-2, atol=1e-2)

    print("KERNEL_OK")
</pallas_src>

<mosaic_0001>
module attributes {stable_mosaic.version = 11 : i64} {
  func.func @gaussian_lstm_kernel(%arg0: memref<8x8x16xf32, #tpu.memory_space<vmem>>, %arg1: memref<8x8x16xf32, #tpu.memory_space<vmem>>, %arg2: memref<8x128xf32, #tpu.memory_space<vmem>>, %arg3: memref<16x32xf32, #tpu.memory_space<vmem>>, %arg4: memref<1x32xf32, #tpu.memory_space<vmem>>, %arg5: memref<2x64x128xf32, #tpu.memory_space<vmem>>, %arg6: memref<2x1x128xf32, #tpu.memory_space<vmem>>, %arg7: memref<32x32xf32, #tpu.memory_space<vmem>>, %arg8: memref<1x32xf32, #tpu.memory_space<vmem>>, %arg9: memref<8x3x8x16xf32, #tpu.memory_space<vmem>>, %arg10: memref<8x160xf32, #tpu.memory_space<vmem>>) attributes {dimension_semantics = [], scalar_prefetch = 0 : i64, scratch_operands = 0 : i64, tpu.core_type = #tpu.core_type<tc>} {
    %c0 = arith.constant 0 : index
    %c0_0 = arith.constant 0 : index
    %0 = vector.load %arg2[%c0, %c0_0] : memref<8x128xf32, #tpu.memory_space<vmem>>, vector<8x128xf32>
    %c0_1 = arith.constant 0 : index
    %c32 = arith.constant 32 : index
    %1 = vector.load %arg10[%c0_1, %c32] : memref<8x160xf32, #tpu.memory_space<vmem>>, vector<8x128xf32>
    tpu.vector_store %arg10[%c0_1, %c32], %0 {strides = array<i32>} : memref<8x160xf32, #tpu.memory_space<vmem>>, vector<8x128xf32>,
    %c0_i32 = arith.constant 0 : i32
    %c8_i32 = arith.constant 8 : i32
    %2 = arith.addi %c0_i32, %c8_i32 : i32
    %c1_i32 = arith.constant 1 : i32
    scf.for %arg11 = %c0_i32 to %2 step %c1_i32  : i32 {
      %c1_i32_3 = arith.constant 1 : i32
      %3 = arith.muli %arg11, %c1_i32_3 : i32
      %c0_i32_4 = arith.constant 0 : i32
      %4 = arith.addi %c0_i32_4, %3 : i32
      %5 = arith.index_cast %4 : i32 to index
      %c0_5 = arith.constant 0 : index
      %c0_6 = arith.constant 0 : index
      %6 = vector.load %arg0[%5, %c0_5, %c0_6] : memref<8x8x16xf32, #tpu.memory_space<vmem>>, vector<1x8x16xf32>
      %7 = vector.shape_cast %6 : vector<1x8x16xf32> to vector<8x16xf32>
      %c0_7 = arith.constant 0 : index
      %c0_8 = arith.constant 0 : index
      %8 = vector.load %arg3[%c0_7, %c0_8] : memref<16x32xf32, #tpu.memory_space<vmem>>, vector<16x32xf32>
      %cst = arith.constant dense<0.000000e+00> : vector<8x32xf32>
      %9 = tpu.matmul %7, %8, %cst {dimension_numbers = #tpu.dot_dimension_numbers<[1], [0], [0], [1], [0, 0, 1, 1], [], []>} : vector<8x16xf32>, vector<16x32xf32>, vector<8x32xf32> -> vector<8x32xf32>
      %c0_9 = arith.constant 0 : index
      %c0_10 = arith.constant 0 : index
      %10 = vector.load %arg4[%c0_9, %c0_10] : memref<1x32xf32, #tpu.memory_space<vmem>>, vector<1x32xf32>
      %11 = vector.broadcast %10 : vector<1x32xf32> to vector<8x32xf32>
      %12 = arith.addf %9, %11 : vector<8x32xf32>
      %c0_11 = arith.constant 0 : index
      %c0_12 = arith.constant 0 : index
      %13 = vector.load %arg10[%c0_11, %c0_12] : memref<8x160xf32, #tpu.memory_space<vmem>>, vector<8x32xf32>
      tpu.vector_store %arg10[%c0_11, %c0_12], %12 {strides = array<i32>} : memref<8x160xf32, #tpu.memory_space<vmem>>, vector<8x32xf32>,
      %c0_13 = arith.constant 0 : index
      %c0_14 = arith.constant 0 : index
      %14 = vector.load %arg10[%c0_13, %c0_14] : memref<8x160xf32, #tpu.memory_space<vmem>>, vector<8x64xf32>
      %c0_15 = arith.constant 0 : index
      %c0_16 = arith.constant 0 : index
      %c0_17 = arith.constant 0 : index
      %15 = vector.load %arg5[%c0_15, %c0_16, %c0_17] : memref<2x64x128xf32, #tpu.memory_space<vmem>>, vector<1x64x128xf32>
      %16 = vector.shape_cast %15 : vector<1x64x128xf32> to vector<64x128xf32>
      %cst_18 = arith.constant dense<0.000000e+00> : vector<8x128xf32>
      %17 = tpu.matmul %14, %16, %cst_18 {dimension_numbers = #tpu.dot_dimension_numbers<[1], [0], [0], [1], [0, 0, 1, 1], [], []>} : vector<8x64xf32>, vector<64x128xf32>, vector<8x128xf32> -> vector<8x128xf32>
      %c0_19 = arith.constant 0 : index
      %c0_20 = arith.constant 0 : index
      %c0_21 = arith.constant 0 : index
      %18 = vector.load %arg6[%c0_19, %c0_20, %c0_21] : memref<2x1x128xf32, #tpu.memory_space<vmem>>, vector<1x1x128xf32>
      %19 = vector.shape_cast %18 : vector<1x1x128xf32> to vector<1x128xf32>
      %20 = vector.broadcast %19 : vector<1x128xf32> to vector<8x128xf32>
      %21 = arith.addf %17, %20 : vector<8x128xf32>
      %cst_22 = arith.constant 5.000000e-01 : f32
      %22 = vector.broadcast %cst_22 : f32 to vector<8x128xf32>
      %23 = arith.mulf %22, %21 : vector<8x128xf32>
      %24 = math.tanh %23 : vector<8x128xf32>
      %cst_23 = arith.constant 5.000000e-01 : f32
      %25 = vector.broadcast %cst_23 : f32 to vector<8x128xf32>
      %26 = arith.mulf %25, %24 : vector<8x128xf32>
      %cst_24 = arith.constant 5.000000e-01 : f32
      %27 = vector.broadcast %cst_24 : f32 to vector<8x128xf32>
      %28 = arith.addf %26, %27 : vector<8x128xf32>
      %29 = math.tanh %21 : vector<8x128xf32>
      %30 = vector.extract_strided_slice %28 {offsets = [0, 0], sizes = [8, 32], strides = [1, 1]} : vector<8x128xf32> to vector<8x32xf32>
      %31 = vector.extract_strided_slice %28 {offsets = [0, 32], sizes = [8, 32], strides = [1, 1]} : vector<8x128xf32> to vector<8x32xf32>
      %32 = vector.extract_strided_slice %29 {offsets = [0, 64], sizes = [8, 32], strides = [1, 1]} : vector<8x128xf32> to vector<8x32xf32>
      %33 = vector.extract_strided_slice %28 {offsets = [0, 96], sizes = [8, 32], strides = [1, 1]} : vector<8x128xf32> to vector<8x32xf32>
      %c0_25 = arith.constant 0 : index
      %c96 = arith.constant 96 : index
      %34 = vector.load %arg10[%c0_25, %c96] : memref<8x160xf32, #tpu.memory_space<vmem>>, vector<8x32xf32>
      %35 = arith.mulf %31, %34 : vector<8x32xf32>
      %36 = arith.mulf %30, %32 : vector<8x32xf32>
      %37 = arith.addf %35, %36 : vector<8x32xf32>
      %38 = math.tanh %37 : vector<8x32xf32>
      %39 = arith.mulf %33, %38 : vector<8x32xf32>
      %c0_26 = arith.constant 0 : index
      %c32_27 = arith.constant 32 : index
      %40 = vector.load %arg10[%c0_26, %c32_27] : memref<8x160xf32, #tpu.memory_space<vmem>>, vector<8x32xf32>
      tpu.vector_store %arg10[%c0_26, %c32_27], %39 {strides = array<i32>} : memref<8x160xf32, #tpu.memory_space<vmem>>, vector<8x32xf32>,
      %c0_28 = arith.constant 0 : index
      %c96_29 = arith.constant 96 : index
      %41 = vector.load %arg10[%c0_28, %c96_29] : memref<8x160xf32, #tpu.memory_space<vmem>>, vector<8x32xf32>
      tpu.vector_store %arg10[%c0_28, %c96_29], %37 {strides = array<i32>} : memref<8x160xf32, #tpu.memory_space<vmem>>, vector<8x32xf32>,
      %c0_30 = arith.constant 0 : index
      %c32_31 = arith.constant 32 : index
      %42 = vector.load %arg10[%c0_30, %c32_31] : memref<8x160xf32, #tpu.memory_space<vmem>>, vector<8x64xf32>
      %c1 = arith.constant 1 : index
      %c0_32 = arith.constant 0 : index
      %c0_33 = arith.constant 0 : index
      %43 = vector.load %arg5[%c1, %c0_32, %c0_33] : memref<2x64x128xf32, #tpu.memory_space<vmem>>, vector<1x64x128xf32>
      %44 = vector.shape_cast %43 : vector<1x64x128xf32> to vector<64x128xf32>
      %cst_34 = arith.constant dense<0.000000e+00> : vector<8x128xf32>
      %45 = tpu.matmul %42, %44, %cst_34 {dimension_numbers = #tpu.dot_dimension_numbers<[1], [0], [0], [1], [0, 0, 1, 1], [], []>} : vector<8x64xf32>, vector<64x128xf32>, vector<8x128xf32> -> vector<8x128xf32>
      %c1_35 = arith.constant 1 : index
      %c0_36 = arith.constant 0 : index
      %c0_37 = arith.constant 0 : index
      %46 = vector.load %arg6[%c1_35, %c0_36, %c0_37] : memref<2x1x128xf32, #tpu.memory_space<vmem>>, vector<1x1x128xf32>
      %47 = vector.shape_cast %46 : vector<1x1x128xf32> to vector<1x128xf32>
      %48 = vector.broadcast %47 : vector<1x128xf32> to vector<8x128xf32>
      %49 = arith.addf %45, %48 : vector<8x128xf32>
      %cst_38 = arith.constant 5.000000e-01 : f32
      %50 = vector.broadcast %cst_38 : f32 to vector<8x128xf32>
      %51 = arith.mulf %50, %49 : vector<8x128xf32>
      %52 = math.tanh %51 : vector<8x128xf32>
      %cst_39 = arith.constant 5.000000e-01 : f32
      %53 = vector.broadcast %cst_39 : f32 to vector<8x128xf32>
      %54 = arith.mulf %53, %52 : vector<8x128xf32>
      %cst_40 = arith.constant 5.000000e-01 : f32
      %55 = vector.broadcast %cst_40 : f32 to vector<8x128xf32>
      %56 = arith.addf %54, %55 : vector<8x128xf32>
      %57 = math.tanh %49 : vector<8x128xf32>
      %58 = vector.extract_strided_slice %56 {offsets = [0, 0], sizes = [8, 32], strides = [1, 1]} : vector<8x128xf32> to vector<8x32xf32>
      %59 = vector.extract_strided_slice %56 {offsets = [0, 32], sizes = [8, 32], strides = [1, 1]} : vector<8x128xf32> to vector<8x32xf32>
      %60 = vector.extract_strided_slice %57 {offsets = [0, 64], sizes = [8, 32], strides = [1, 1]} : vector<8x128xf32> to vector<8x32xf32>
      %61 = vector.extract_strided_slice %56 {offsets = [0, 96], sizes = [8, 32], strides = [1, 1]} : vector<8x128xf32> to vector<8x32xf32>
      %c0_41 = arith.constant 0 : index
      %c128 = arith.constant 128 : index
      %62 = vector.load %arg10[%c0_41, %c128] : memref<8x160xf32, #tpu.memory_space<vmem>>, vector<8x32xf32>
      %63 = arith.mulf %59, %62 : vector<8x32xf32>
      %64 = arith.mulf %58, %60 : vector<8x32xf32>
      %65 = arith.addf %63, %64 : vector<8x32xf32>
      %66 = math.tanh %65 : vector<8x32xf32>
      %67 = arith.mulf %61, %66 : vector<8x32xf32>
      %c0_42 = arith.constant 0 : index
      %c64 = arith.constant 64 : index
      %68 = vector.load %arg10[%c0_42, %c64] : memref<8x160xf32, #tpu.memory_space<vmem>>, vector<8x32xf32>
      tpu.vector_store %arg10[%c0_42, %c64], %67 {strides = array<i32>} : memref<8x160xf32, #tpu.memory_space<vmem>>, vector<8x32xf32>,
      %c0_43 = arith.constant 0 : index
      %c128_44 = arith.constant 128 : index
      %69 = vector.load %arg10[%c0_43, %c128_44] : memref<8x160xf32, #tpu.memory_space<vmem>>, vector<8x32xf32>
      tpu.vector_store %arg10[%c0_43, %c128_44], %65 {strides = array<i32>} : memref<8x160xf32, #tpu.memory_space<vmem>>, vector<8x32xf32>,
      %c0_45 = arith.constant 0 : index
      %c0_46 = arith.constant 0 : index
      %70 = vector.load %arg7[%c0_45, %c0_46] : memref<32x32xf32, #tpu.memory_space<vmem>>, vector<32x32xf32>
      %cst_47 = arith.constant dense<0.000000e+00> : vector<8x32xf32>
      %71 = tpu.matmul %67, %70, %cst_47 {dimension_numbers = #tpu.dot_dimension_numbers<[1], [0], [0], [1], [0, 0, 1, 1], [], []>} : vector<8x32xf32>, vector<32x32xf32>, vector<8x32xf32> -> vector<8x32xf32>
      %c0_48 = arith.constant 0 : index
      %c0_49 = arith.constant 0 : index
      %72 = vector.load %arg8[%c0_48, %c0_49] : memref<1x32xf32, #tpu.memory_space<vmem>>, vector<1x32xf32>
      %73 = vector.broadcast %72 : vector<1x32xf32> to vector<8x32xf32>
      %74 = arith.addf %71, %73 : vector<8x32xf32>
      %75 = vector.extract_strided_slice %74 {offsets = [0, 0], sizes = [8, 16], strides = [1, 1]} : vector<8x32xf32> to vector<8x16xf32>
      %76 = vector.extract_strided_slice %74 {offsets = [0, 16], sizes = [8, 16], strides = [1, 1]} : vector<8x32xf32> to vector<8x16xf32>
      %cst_50 = arith.constant 2.000000e+01 : f32
      %77 = vector.broadcast %cst_50 : f32 to vector<8x16xf32>
      %78 = arith.cmpf ogt, %76, %77 : vector<8x16xf32>
      %cst_51 = arith.constant 2.000000e+01 : f32
      %79 = vector.broadcast %cst_51 : f32 to vector<8x16xf32>
      %80 = arith.minimumf %76, %79 : vector<8x16xf32>
      %81 = math.exp %80 : vector<8x16xf32>
      %82 = math.log1p %81 : vector<8x16xf32>
      %83 = arith.select %78, %76, %82 : vector<8x16xi1>, vector<8x16xf32>
      %84 = arith.index_cast %4 : i32 to index
      %c0_52 = arith.constant 0 : index
      %c0_53 = arith.constant 0 : index
      %85 = vector.load %arg1[%84, %c0_52, %c0_53] : memref<8x8x16xf32, #tpu.memory_space<vmem>>, vector<1x8x16xf32>
      %86 = vector.shape_cast %85 : vector<1x8x16xf32> to vector<8x16xf32>
      %cst_54 = arith.constant 5.000000e-01 : f32
      %87 = vector.broadcast %cst_54 : f32 to vector<8x16xf32>
      %88 = arith.mulf %87, %83 : vector<8x16xf32>
      %89 = math.exp %88 : vector<8x16xf32>
      %90 = arith.mulf %86, %89 : vector<8x16xf32>
      %91 = arith.addf %90, %75 : vector<8x16xf32>
      %92 = arith.index_cast %4 : i32 to index
      %c0_55 = arith.constant 0 : index
      %c0_56 = arith.constant 0 : index
      %c0_57 = arith.constant 0 : index
      %93 = vector.load %arg9[%92, %c0_55, %c0_56, %c0_57] : memref<8x3x8x16xf32, #tpu.memory_space<vmem>>, vector<1x1x8x16xf32>
      %94 = vector.shape_cast %93 : vector<1x1x8x16xf32> to vector<8x16xf32>
      %95 = vector.shape_cast %91 : vector<8x16xf32> to vector<1x1x8x16xf32>
      tpu.vector_store %arg9[%92, %c0_55, %c0_56, %c0_57], %95 {strides = array<i32>} : memref<8x3x8x16xf32, #tpu.memory_space<vmem>>, vector<1x1x8x16xf32>,
      %96 = arith.index_cast %4 : i32 to index
      %c1_58 = arith.constant 1 : index
      %c0_59 = arith.constant 0 : index
      %c0_60 = arith.constant 0 : index
      %97 = vector.load %arg9[%96, %c1_58, %c0_59, %c0_60] : memref<8x3x8x16xf32, #tpu.memory_space<vmem>>, vector<1x1x8x16xf32>
      %98 = vector.shape_cast %97 : vector<1x1x8x16xf32> to vector<8x16xf32>
      %99 = vector.shape_cast %75 : vector<8x16xf32> to vector<1x1x8x16xf32>
      tpu.vector_store %arg9[%96, %c1_58, %c0_59, %c0_60], %99 {strides = array<i32>} : memref<8x3x8x16xf32, #tpu.memory_space<vmem>>, vector<1x1x8x16xf32>,
      %100 = arith.index_cast %4 : i32 to index
      %c2 = arith.constant 2 : index
      %c0_61 = arith.constant 0 : index
      %c0_62 = arith.constant 0 : index
      %101 = vector.load %arg9[%100, %c2, %c0_61, %c0_62] : memref<8x3x8x16xf32, #tpu.memory_space<vmem>>, vector<1x1x8x16xf32>
      %102 = vector.shape_cast %101 : vector<1x1x8x16xf32> to vector<8x16xf32>
      %103 = vector.shape_cast %83 : vector<8x16xf32> to vector<1x1x8x16xf32>
      tpu.vector_store %arg9[%100, %c2, %c0_61, %c0_62], %103 {strides = array<i32>} : memref<8x3x8x16xf32, #tpu.memory_space<vmem>>, vector<1x1x8x16xf32>,
    }
    %c8_i32_2 = arith.constant 8 : i32
    return
  }
}

</mosaic_0001>

<llo_original>
// kernel: tpu_custom_call.1
$region0: #{tpu_custom_call.1}
  #allocation0 [shape = 'u32[]', space=smem, size = 0x4, offset = 0x4, fixed_abs, tag = 'smem constant byte address 0x4 - core index']
  #allocation1 [shape = 'u32[144,128]{1,0:T(1,128)}', space=vmem, size = 0x12000, scoped, tag = 'internal scratch']
  %s0 = inlined_call_operand.hbm [shape: f32[8,8,16], index: 0, kind: input, shape index: {}]
  %s1 = inlined_call_operand.hbm [shape: f32[8,8,16], index: 1, kind: input, shape index: {}]
  %s2 = inlined_call_operand.hbm [shape: f32[8,128], index: 2, kind: input, shape index: {}]
  %s3 = inlined_call_operand.hbm [shape: f32[16,32], index: 3, kind: input, shape index: {}]
  %s4 = inlined_call_operand.vmem [shape: f32[1,32], index: 4, kind: input, shape index: {}]
  %s5 = inlined_call_operand.hbm [shape: f32[2,64,128], index: 5, kind: input, shape index: {}]
  %s6 = inlined_call_operand.vmem [shape: f32[2,1,128], index: 6, kind: input, shape index: {}]
  %s7 = inlined_call_operand.hbm [shape: f32[32,32], index: 7, kind: input, shape index: {}]
  %s8 = inlined_call_operand.vmem [shape: f32[1,32], index: 8, kind: input, shape index: {}]
  %s9 = inlined_call_operand.hbm [shape: f32[8,3,8,16], index: 9, kind: output, shape index: {0}]
  %s10 = inlined_call_operand.hbm [shape: f32[8,160], index: 10, kind: output, shape index: {1}]
  %11 = xla_tuple %s9, %s10
  %s12 = sld [smem:[#allocation0]]
  $region85: #{tpu_custom_call.1} parent=0
    _
  %s14 = ssub.s32 1, %s12
  %s15 = scalar_select 0, %s14, %s12
  $region1: #{tpu_custom_call.1} parent=0
    #allocation2 [shape = 'u8[32768]{0}', space=vmem, size = 0x8000, scoped, tag = 'input window, operand 0, single buffered']
    #allocation3 [shape = 's32[1]{0}', space=sflag, size = 0x4, scoped, tag = 'scoped memory for tpu_custom_call.1']
    #allocation4 [shape = 's32[1]{0}', space=sflag, size = 0x4, scoped, tag = 'scoped memory for tpu_custom_call.1']
    #allocation5 [shape = 'u8[32768]{0}', space=vmem, size = 0x8000, scoped, tag = 'input window, operand 1, single buffered']
    #allocation6 [shape = 's32[1]{0}', space=sflag, size = 0x4, scoped, tag = 'scoped memory for tpu_custom_call.1']
    #allocation7 [shape = 'u8[4096]{0}', space=vmem, size = 0x1000, scoped, tag = 'input window, operand 2, single buffered']
    #allocation8 [shape = 'u8[8192]{0}', space=vmem, size = 0x2000, scoped, tag = 'input window, operand 3, single buffered']
    #allocation9 [shape = 's32[1]{0}', space=sflag, size = 0x4, scoped, tag = 'scoped memory for tpu_custom_call.1']
    #allocation10 [shape = 'u8[65536]{0}', space=vmem, size = 0x10000, scoped, tag = 'input window, operand 5, single buffered']
    #allocation11 [shape = 'u8[16384]{0}', space=vmem, size = 0x4000, scoped, tag = 'input window, operand 7, single buffered']
    #allocation12 [shape = 's32[1]{0}', space=sflag, size = 0x4, scoped, tag = 'scoped memory for tpu_custom_call.1']
    #allocation13 [shape = 'u8[98304]{0}', space=vmem, size = 0x18000, scoped, tag = 'output window, operand 0, single buffered']
    #allocation14 [shape = 'u8[8192]{0}', space=vmem, size = 0x2000, scoped, tag = 'output window, operand 1, single buffered']
    #allocation15 [shape = 's32[1]{0}', space=sflag, size = 0x4, scoped, tag = 'scoped memory for tpu_custom_call.1']
    %16 = vsyncpa [#allocation3], 0
    %17 = vsyncpa [#allocation6], 0
    %18 = vsyncpa [#allocation9], 0
    %19 = vsyncpa [#allocation12], 0
    %20 = vsyncpa [#allocation4], 0
    %21 = vsyncpa [#allocation15], 0
    // Predicated region
    $region2: #{tpu_custom_call.1} parent=1 // pred_check
      _
    $region3: #{tpu_custom_call.1} parent=1 // pred_check_branch
      %23 = sbr.rel (0) target = $region5
    $region4: #{tpu_custom_call.1} parent=1 // pred_region
      %s25 = ssub.s32 1024, 1024
      %26 = vsyncadd [#allocation3], %s25
      %s27 = sshll.u32 [#allocation2], 4
      %s28 = int_to_ptr.vmem [resolvable:$true] %s27
      %33 = dma.hbm_to_vmem [thread:$0]  %s0, 1024, %s28, [#allocation3], 128, 128, 8
    $region5: #{tpu_custom_call.1} parent=1 // pred_fallthru
      _
    // Predicated region
    $region6: #{tpu_custom_call.1} parent=1 // pred_check
      _
    $region7: #{tpu_custom_call.1} parent=1 // pred_check_branch
      %35 = sbr.rel (0) target = $region9
    $region8: #{tpu_custom_call.1} parent=1 // pred_region
      %s37 = ssub.s32 1024, 1024
      %38 = vsyncadd [#allocation6], %s37
      %s39 = sshll.u32 [#allocation5], 4
      %s40 = int_to_ptr.vmem [resolvable:$true] %s39
      %45 = dma.hbm_to_vmem [thread:$0]  %s1, 1024, %s40, [#allocation6], 128, 128, 8
    $region9: #{tpu_custom_call.1} parent=1 // pred_fallthru
      _
    // Predicated region
    $region10: #{tpu_custom_call.1} parent=1 // pred_check
      _
    $region11: #{tpu_custom_call.1} parent=1 // pred_check_branch
      %47 = sbr.rel (0) target = $region13
    $region12: #{tpu_custom_call.1} parent=1 // pred_region
      %s49 = ssub.s32 128, 128
      %50 = vsyncadd [#allocation6], %s49
      %s52 = sshll.u32 [#allocation7], 4
      %s53 = int_to_ptr.vmem [resolvable:$true] %s52
      %55 = dma.hbm_to_vmem [thread:$0]  %s2, 128, %s53, [#allocation6]
    $region13: #{tpu_custom_call.1} parent=1 // pred_fallthru
      _
    // Predicated region
    $region14: #{tpu_custom_call.1} parent=1 // pred_check
      _
    $region15: #{tpu_custom_call.1} parent=1 // pred_check_branch
      %57 = sbr.rel (0) target = $region17
    $region16: #{tpu_custom_call.1} parent=1 // pred_region
      %s59 = ssub.s32 256, 256
      %60 = vsyncadd [#allocation9], %s59
      %s61 = sshll.u32 [#allocation8], 4
      %s62 = int_to_ptr.vmem [resolvable:$true] %s61
      %67 = dma.hbm_to_vmem [thread:$0]  %s3, 256, %s62, [#allocation9], 128, 128, 8
    $region17: #{tpu_custom_call.1} parent=1 // pred_fallthru
      _
    // Predicated region
    $region18: #{tpu_custom_call.1} parent=1 // pred_check
      _
    $region19: #{tpu_custom_call.1} parent=1 // pred_check_branch
      %69 = sbr.rel (0) target = $region21
    $region20: #{tpu_custom_call.1} parent=1 // pred_region
      _
    $region21: #{tpu_custom_call.1} parent=1 // pred_fallthru
      _
    // Predicated region
    $region22: #{tpu_custom_call.1} parent=1 // pred_check
      _
    $region23: #{tpu_custom_call.1} parent=1 // pred_check_branch
      %71 = sbr.rel (0) target = $region25
    $region24: #{tpu_custom_call.1} parent=1 // pred_region
      %s73 = ssub.s32 2048, 2048
      %74 = vsyncadd [#allocation9], %s73
      %s75 = sshll.u32 [#allocation10], 4
      %s76 = int_to_ptr.vmem [resolvable:$true] %s75
      %81 = dma.hbm_to_vmem [thread:$0]  %s5, 2048, %s76, [#allocation9], 128, 128, 8
    $region25: #{tpu_custom_call.1} parent=1 // pred_fallthru
      _
    // Predicated region
    $region26: #{tpu_custom_call.1} parent=1 // pred_check
      _
    $region27: #{tpu_custom_call.1} parent=1 // pred_check_branch
      %83 = sbr.rel (0) target = $region29
    $region28: #{tpu_custom_call.1} parent=1 // pred_region
      _
    $region29: #{tpu_custom_call.1} parent=1 // pred_fallthru
      _
    // Predicated region
    $region30: #{tpu_custom_call.1} parent=1 // pred_check
      _
    $region31: #{tpu_custom_call.1} parent=1 // pred_check_branch
      %85 = sbr.rel (0) target = $region33
    $region32: #{tpu_custom_call.1} parent=1 // pred_region
      %s87 = ssub.s32 512, 512
      %88 = vsyncadd [#allocation12], %s87
      %s89 = sshll.u32 [#allocation11], 4
      %s90 = int_to_ptr.vmem [resolvable:$true] %s89
      %95 = dma.hbm_to_vmem [thread:$0]  %s7, 512, %s90, [#allocation12], 128, 128, 8
    $region33: #{tpu_custom_call.1} parent=1 // pred_fallthru
      _
    // Predicated region
    $region34: #{tpu_custom_call.1} parent=1 // pred_check
      _
    $region35: #{tpu_custom_call.1} parent=1 // pred_check_branch
      %97 = sbr.rel (0) target = $region37
    $region36: #{tpu_custom_call.1} parent=1 // pred_region
      _
    $region37: #{tpu_custom_call.1} parent=1 // pred_fallthru
      _
    // Predicated region
    $region38: #{tpu_custom_call.1} parent=1 // pred_check
      _
    $region39: #{tpu_custom_call.1} parent=1 // pred_check_branch
      %99 = sbr.rel (0) target = $region41
    $region40: #{tpu_custom_call.1} parent=1 // pred_region
      %100 = dma.done [#allocation3], 1024
    $region41: #{tpu_custom_call.1} parent=1 // pred_fallthru
      _
    // Predicated region
    $region42: #{tpu_custom_call.1} parent=1 // pred_check
      _
    $region43: #{tpu_custom_call.1} parent=1 // pred_check_branch
      %102 = sbr.rel (0) target = $region45
    $region44: #{tpu_custom_call.1} parent=1 // pred_region
      %103 = dma.done [#allocation6], 1024
    $region45: #{tpu_custom_call.1} parent=1 // pred_fallthru
      _
    // Predicated region
    $region46: #{tpu_custom_call.1} parent=1 // pred_check
      _
    $region47: #{tpu_custom_call.1} parent=1 // pred_check_branch
      %105 = sbr.rel (0) target = $region49
    $region48: #{tpu_custom_call.1} parent=1 // pred_region
      %106 = dma.done [#allocation6], 128
    $region49: #{tpu_custom_call.1} parent=1 // pred_fallthru
      _
    // Predicated region
    $region50: #{tpu_custom_call.1} parent=1 // pred_check
      _
    $region51: #{tpu_custom_call.1} parent=1 // pred_check_branch
      %108 = sbr.rel (0) target = $region53
    $region52: #{tpu_custom_call.1} parent=1 // pred_region
      %109 = dma.done [#allocation9], 256
    $region53: #{tpu_custom_call.1} parent=1 // pred_fallthru
      _
    // Predicated region
    $region54: #{tpu_custom_call.1} parent=1 // pred_check
      _
    $region55: #{tpu_custom_call.1} parent=1 // pred_check_branch
      %111 = sbr.rel (0) target = $region57
    $region56: #{tpu_custom_call.1} parent=1 // pred_region
      %112 = dma.done [#allocation9], 2048
    $region57: #{tpu_custom_call.1} parent=1 // pred_fallthru
      _
    // Predicated region
    $region58: #{tpu_custom_call.1} parent=1 // pred_check
      _
    $region59: #{tpu_custom_call.1} parent=1 // pred_check_branch
      %114 = sbr.rel (0) target = $region61
    $region60: #{tpu_custom_call.1} parent=1 // pred_region
      %115 = dma.done [#allocation12], 512
    $region61: #{tpu_custom_call.1} parent=1 // pred_fallthru
      _
    %v116 = vld [vmem:[#allocation7] sm:$0xff]
    %118 = vrot.lane.b32.xlu0 %v116, 32
    %v119 = vpop.permute.xlu0 %118
    %vm121 = vcmask 1047808
    %122 = vst.msk [vmem:[#allocation14] sm:$0xff] %vm121, %v119
    %vm123 = vcmask 261120
    %124 = vst.msk [vmem:[#allocation14 + $0x8] sm:$0xff] %vm123, %v119
    loop: start=0, step=1, limit=8
    $region62: #{tpu_custom_call.1} parent=1 // loop_pre_header
      _
    $region63: #{tpu_custom_call.1} parent=1 // loop_header
      %s126 = sphi 0, %s130
      %p127 = scmp.ge.s32.totalorder %s126, 8
    $region64: #{tpu_custom_call.1} parent=1 // loop_header_branch
      %129 = sbr.rel (%p127) target = $region68
    $region65: #{tpu_custom_call.1} parent=1 // loop_body
      %s131 = smul.u32 %s126, 8
      %s132 = scalar_lea.vmem [#allocation2], %s131
      %v133 = vld [vmem:[%s132] sm:$0xff]
      %v134 = vld [vmem:[#allocation8] sm:$0xff]
      %v135 = vld [vmem:[#allocation8 + $0x8] sm:$0xff]
      %v136 = vld [vmem:[%s4] sm:$0x1]
      %v138 = vlaneseq
      %v139 = vshrl.u32 %v138, 7
      %v140 = vsub.s32 0, %v139
      %v141 = vrot.slane %v136, %v140
      %vm143 = vcmask 130048
      %v145 = vsel %vm143, %v133, 0
      %147 = vmatprep.subr.mxu0 0.0
      %148 = vmatpush1.msra.mxu0 %v134
      %149 = vmatprep.subr.mxu0 0.0
      %150 = vmatpush1.msra.mxu0 %v135
      %151 = vmatprep.subr.mxu0 0.0
      %152 = vmatpush1.msra.mxu0 0.0
      %153 = vmatprep.subr.mxu0 0.0
      %154 = vmatpush1.msra.mxu0 0.0
      %155 = vmatprep.subr.mxu0 0.0
      %156 = vmatpush1.msra.mxu0 0.0
      %157 = vmatprep.subr.mxu0 0.0
      %158 = vmatpush1.msra.mxu0 0.0
      %159 = vmatprep.subr.mxu0 0.0
      %160 = vmatpush1.msra.mxu0 0.0
      %161 = vmatprep.subr.mxu0 0.0
      %162 = vmatpush1.msra.mxu0 0.0
      %163 = vmatprep.subr.mxu0 0.0
      %164 = vmatpush1.msra.mxu0 0.0
      %165 = vmatprep.subr.mxu0 0.0
      %166 = vmatpush1.msra.mxu0 0.0
      %167 = vmatprep.subr.mxu0 0.0
      %168 = vmatpush1.msra.mxu0 0.0
      %169 = vmatprep.subr.mxu0 0.0
      %170 = vmatpush1.msra.mxu0 0.0
      %171 = vmatprep.subr.mxu0 0.0
      %172 = vmatpush1.msra.mxu0 0.0
      %173 = vmatprep.subr.mxu0 0.0
      %174 = vmatpush1.msra.mxu0 0.0
      %175 = vmatprep.subr.mxu0 0.0
      %176 = vmatpush1.msra.mxu0 0.0
      %177 = vmatprep.subr.mxu0 0.0
      %178 = vmatpush1.msra.mxu0 0.0
      %179 = vmatprep.subr.mxu0 0.0
      %180 = vmatpush1.msra.mxu0 0.0
      %181 = vmatprep.subr.mxu0 0.0
      %182 = vmatpush1.msra.mxu0 0.0
      %183 = vmatprep.subr.mxu0 0.0
      %184 = vmatpush1.msra.mxu0 0.0
      %185 = vmatprep.subr.mxu0 0.0
      %186 = vmatpush1.msra.mxu0 0.0
      %187 = vmatprep.subr.mxu0 0.0
      %188 = vmatpush1.msra.mxu0 0.0
      %189 = vmatprep.subr.mxu0 0.0
      %190 = vmatpush1.msra.mxu0 0.0
      %191 = vmatprep.subr.mxu0 0.0
      %192 = vmatpush1.msra.mxu0 0.0
      %193 = vmatprep.subr.mxu0 0.0
      %194 = vmatpush1.msra.mxu0 0.0
      %195 = vmatprep.subr.mxu0 0.0
      %196 = vmatpush1.msra.mxu0 0.0
      %197 = vmatprep.subr.mxu0 0.0
      %198 = vmatpush1.msra.mxu0 0.0
      %199 = vmatprep.subr.mxu0 0.0
      %200 = vmatpush1.msra.mxu0 0.0
      %201 = vmatprep.subr.mxu0 0.0
      %202 = vmatpush1.msra.mxu0 0.0
      %203 = vmatprep.subr.mxu0 0.0
      %204 = vmatpush1.msra.mxu0 0.0
      %205 = vmatprep.subr.mxu0 0.0
      %206 = vmatpush1.msra.mxu0 0.0
      %207 = vmatprep.subr.mxu0 0.0
      %208 = vmatpush1.msra.mxu0 0.0
      %209 = vmatprep.subr.mxu0 0.0
      %210 = vmatpush1.msra.mxu0 0.0
      %211 = vmatprep.mubr.f32.mxu0 0.0
      %212 = vmatmul.mubr.f32.gmra.mrb[0].mxu0 %v145
      %v213 = vpop.f32.mrb[0].mxu0
      %v214 = vadd.f32 %v141, %v213
      %v215 = vpop.f32.mrb[0].mxu0
      %216 = vdwg.mxu0
      %217 = vst.msk [vmem:[#allocation14] sm:$0xff] %vm123, %v214
      %v218 = vld [vmem:[#allocation14] sm:$0xff]
      %v219 = vld [vmem:[#allocation10] sm:$0xff]
      %v220 = vld [vmem:[#allocation10 + $0x8] sm:$0xff]
      %v221 = vld [vmem:[#allocation10 + $0x10] sm:$0xff]
      %v222 = vld [vmem:[#allocation10 + $0x18] sm:$0xff]
      %v223 = vld [vmem:[#allocation10 + $0x20] sm:$0xff]
      %v224 = vld [vmem:[#allocation10 + $0x28] sm:$0xff]
      %v225 = vld [vmem:[#allocation10 + $0x30] sm:$0xff]
      %v226 = vld [vmem:[#allocation10 + $0x38] sm:$0xff]
      %v227 = vld [vmem:[%s6] sm:$0x1]
      %v229 = vlaneseq
      %v230 = vshrl.u32 %v229, 7
      %v231 = vsub.s32 0, %v230
      %v232 = vrot.slane %v227, %v231
      %vm234 = vcmask 523264
      %v236 = vsel %vm234, %v218, 0
      %238 = vmatprep.subr.mxu0 0.0
      %239 = vmatpush1.msra.mxu0 %v219
      %240 = vmatprep.subr.mxu0 0.0
      %241 = vmatpush1.msra.mxu0 %v220
      %242 = vmatprep.subr.mxu0 0.0
      %243 = vmatpush1.msra.mxu0 %v221
      %244 = vmatprep.subr.mxu0 0.0
      %245 = vmatpush1.msra.mxu0 %v222
      %246 = vmatprep.subr.mxu0 0.0
      %247 = vmatpush1.msra.mxu0 %v223
      %248 = vmatprep.subr.mxu0 0.0
      %249 = vmatpush1.msra.mxu0 %v224
      %250 = vmatprep.subr.mxu0 0.0
      %251 = vmatpush1.msra.mxu0 %v225
      %252 = vmatprep.subr.mxu0 0.0
      %253 = vmatpush1.msra.mxu0 %v226
      %254 = vmatprep.subr.mxu0 0.0
      %255 = vmatpush1.msra.mxu0 0.0
      %256 = vmatprep.subr.mxu0 0.0
      %257 = vmatpush1.msra.mxu0 0.0
      %258 = vmatprep.subr.mxu0 0.0
      %259 = vmatpush1.msra.mxu0 0.0
      %260 = vmatprep.subr.mxu0 0.0
      %261 = vmatpush1.msra.mxu0 0.0
      %262 = vmatprep.subr.mxu0 0.0
      %263 = vmatpush1.msra.mxu0 0.0
      %264 = vmatprep.subr.mxu0 0.0
      %265 = vmatpush1.msra.mxu0 0.0
      %266 = vmatprep.subr.mxu0 0.0
      %267 = vmatpush1.msra.mxu0 0.0
      %268 = vmatprep.subr.mxu0 0.0
      %269 = vmatpush1.msra.mxu0 0.0
      %270 = vmatprep.subr.mxu0 0.0
      %271 = vmatpush1.msra.mxu0 0.0
      %272 = vmatprep.subr.mxu0 0.0
      %273 = vmatpush1.msra.mxu0 0.0
      %274 = vmatprep.subr.mxu0 0.0
      %275 = vmatpush1.msra.mxu0 0.0
      %276 = vmatprep.subr.mxu0 0.0
      %277 = vmatpush1.msra.mxu0 0.0
      %278 = vmatprep.subr.mxu0 0.0
      %279 = vmatpush1.msra.mxu0 0.0
      %280 = vmatprep.subr.mxu0 0.0
      %281 = vmatpush1.msra.mxu0 0.0
      %282 = vmatprep.subr.mxu0 0.0
      %283 = vmatpush1.msra.mxu0 0.0
      %284 = vmatprep.subr.mxu0 0.0
      %285 = vmatpush1.msra.mxu0 0.0
      %286 = vmatprep.subr.mxu0 0.0
      %287 = vmatpush1.msra.mxu0 0.0
      %288 = vmatprep.subr.mxu0 0.0
      %289 = vmatpush1.msra.mxu0 0.0
      %290 = vmatprep.subr.mxu0 0.0
      %291 = vmatpush1.msra.mxu0 0.0
      %292 = vmatprep.subr.mxu0 0.0
      %293 = vmatpush1.msra.mxu0 0.0
      %294 = vmatprep.subr.mxu0 0.0
      %295 = vmatpush1.msra.mxu0 0.0
      %296 = vmatprep.subr.mxu0 0.0
      %297 = vmatpush1.msra.mxu0 0.0
      %298 = vmatprep.subr.mxu0 0.0
      %299 = vmatpush1.msra.mxu0 0.0
      %300 = vmatprep.subr.mxu0 0.0
      %301 = vmatpush1.msra.mxu0 0.0
      %302 = vmatprep.mubr.f32.mxu0 0.0
      %303 = vmatmul.mubr.f32.gmra.mrb[0].mxu0 %v236
      %v304 = vpop.f32.mrb[0].mxu0
      %v305 = vadd.f32 %v232, %v304
      %v306 = vpop.f32.mrb[0].mxu0
      %307 = vdwg.mxu0
      %v308 = vmul.f32 %v305, 0.5
      %v309 = vtanh.pop %v308
      %v310 = vmul.f32 %v309, 0.5
      %v311 = vadd.f32 %v310, 0.5
      %v312 = vtanh.pop %v305
      %313 = vrot.lane.b32.xlu0 %v218, 64
      %v314 = vpop.permute.xlu0 %313
      %v316 = vmul.f32 %v311, %v314
      %318 = vrot.lane.b32.xlu0 %v312, 64
      %v319 = vpop.permute.xlu0 %318
      %v321 = vmul.f32 %v311, %v319
      %323 = vrot.lane.b32.xlu0 %v321, 32
      %v324 = vpop.permute.xlu0 %323
      %v326 = vadd.f32 %v316, %v324
      %v327 = vtanh.pop %v326
      %329 = vrot.lane.b32.xlu0 %v327, 64
      %v330 = vpop.permute.xlu0 %329
      %v332 = vmul.f32 %v311, %v330
      %334 = vrot.lane.b32.xlu0 %v332, 64
      %v335 = vpop.permute.xlu0 %334
      %vm337 = vcmask 523520
      %338 = vst.msk [vmem:[#allocation14] sm:$0xff] %vm337, %v335
      %340 = vrot.lane.b32.xlu0 %v326, 64
      %v341 = vpop.permute.xlu0 %340
      %vm343 = vcmask 1048320
      %344 = vst.msk [vmem:[#allocation14] sm:$0xff] %vm343, %v341
      %v345 = vld [vmem:[#allocation14] sm:$0xff]
      %s346 = scalar_lea.vmem [#allocation10], 64
      %v347 = vld [vmem:[%s346] sm:$0xff]
      %v348 = vld [vmem:[%s346 + $0x8] sm:$0xff]
      %v349 = vld [vmem:[%s346 + $0x10] sm:$0xff]
      %v350 = vld [vmem:[%s346 + $0x18] sm:$0xff]
      %v351 = vld [vmem:[%s346 + $0x20] sm:$0xff]
      %v352 = vld [vmem:[%s346 + $0x28] sm:$0xff]
      %v353 = vld [vmem:[%s346 + $0x30] sm:$0xff]
      %v354 = vld [vmem:[%s346 + $0x38] sm:$0xff]
      %s355 = scalar_lea.vmem %s6, 1
      %v356 = vld [vmem:[%s355] sm:$0x1]
      %v358 = vlaneseq
      %v359 = vshrl.u32 %v358, 7
      %v360 = vsub.s32 0, %v359
      %v361 = vrot.slane %v356, %v360
      %364 = vrot.lane.b32.xlu0 %v345, 96
      %v365 = vpop.permute.xlu0 %364
      %v366 = vsel %vm234, %v365, 0
      %368 = vmatprep.subr.mxu0 0.0
      %369 = vmatpush1.msra.mxu0 %v347
      %370 = vmatprep.subr.mxu0 0.0
      %371 = vmatpush1.msra.mxu0 %v348
      %372 = vmatprep.subr.mxu0 0.0
      %373 = vmatpush1.msra.mxu0 %v349
      %374 = vmatprep.subr.mxu0 0.0
      %375 = vmatpush1.msra.mxu0 %v350
      %376 = vmatprep.subr.mxu0 0.0
      %377 = vmatpush1.msra.mxu0 %v351
      %378 = vmatprep.subr.mxu0 0.0
      %379 = vmatpush1.msra.mxu0 %v352
      %380 = vmatprep.subr.mxu0 0.0
      %381 = vmatpush1.msra.mxu0 %v353
      %382 = vmatprep.subr.mxu0 0.0
      %383 = vmatpush1.msra.mxu0 %v354
      %384 = vmatprep.subr.mxu0 0.0
      %385 = vmatpush1.msra.mxu0 0.0
      %386 = vmatprep.subr.mxu0 0.0
      %387 = vmatpush1.msra.mxu0 0.0
      %388 = vmatprep.subr.mxu0 0.0
      %389 = vmatpush1.msra.mxu0 0.0
      %390 = vmatprep.subr.mxu0 0.0
      %391 = vmatpush1.msra.mxu0 0.0
      %392 = vmatprep.subr.mxu0 0.0
      %393 = vmatpush1.msra.mxu0 0.0
      %394 = vmatprep.subr.mxu0 0.0
      %395 = vmatpush1.msra.mxu0 0.0
      %396 = vmatprep.subr.mxu0 0.0
      %397 = vmatpush1.msra.mxu0 0.0
      %398 = vmatprep.subr.mxu0 0.0
      %399 = vmatpush1.msra.mxu0 0.0
      %400 = vmatprep.subr.mxu0 0.0
      %401 = vmatpush1.msra.mxu0 0.0
      %402 = vmatprep.subr.mxu0 0.0
      %403 = vmatpush1.msra.mxu0 0.0
      %404 = vmatprep.subr.mxu0 0.0
      %405 = vmatpush1.msra.mxu0 0.0
      %406 = vmatprep.subr.mxu0 0.0
      %407 = vmatpush1.msra.mxu0 0.0
      %408 = vmatprep.subr.mxu0 0.0
      %409 = vmatpush1.msra.mxu0 0.0
      %410 = vmatprep.subr.mxu0 0.0
      %411 = vmatpush1.msra.mxu0 0.0
      %412 = vmatprep.subr.mxu0 0.0
      %413 = vmatpush1.msra.mxu0 0.0
      %414 = vmatprep.subr.mxu0 0.0
      %415 = vmatpush1.msra.mxu0 0.0
      %416 = vmatprep.subr.mxu0 0.0
      %417 = vmatpush1.msra.mxu0 0.0
      %418 = vmatprep.subr.mxu0 0.0
      %419 = vmatpush1.msra.mxu0 0.0
      %420 = vmatprep.subr.mxu0 0.0
      %421 = vmatpush1.msra.mxu0 0.0
      %422 = vmatprep.subr.mxu0 0.0
      %423 = vmatpush1.msra.mxu0 0.0
      %424 = vmatprep.subr.mxu0 0.0
      %425 = vmatpush1.msra.mxu0 0.0
      %426 = vmatprep.subr.mxu0 0.0
      %427 = vmatpush1.msra.mxu0 0.0
      %428 = vmatprep.subr.mxu0 0.0
      %429 = vmatpush1.msra.mxu0 0.0
      %430 = vmatprep.subr.mxu0 0.0
      %431 = vmatpush1.msra.mxu0 0.0
      %432 = vmatprep.mubr.f32.mxu0 0.0
      %433 = vmatmul.mubr.f32.gmra.mrb[0].mxu0 %v366
      %v434 = vpop.f32.mrb[0].mxu0
      %v435 = vadd.f32 %v361, %v434
      %v436 = vpop.f32.mrb[0].mxu0
      %437 = vdwg.mxu0
      %v438 = vmul.f32 %v435, 0.5
      %v439 = vtanh.pop %v438
      %v440 = vmul.f32 %v439, 0.5
      %v441 = vadd.f32 %v440, 0.5
      %v442 = vtanh.pop %v435
      %v443 = vld [vmem:[#allocation14 + $0x8] sm:$0xff]
      %445 = vrot.lane.b32.xlu0 %v443, 32
      %v446 = vpop.permute.xlu0 %445
      %v448 = vmul.f32 %v441, %v446
      %450 = vrot.lane.b32.xlu0 %v442, 64
      %v451 = vpop.permute.xlu0 %450
      %v453 = vmul.f32 %v441, %v451
      %455 = vrot.lane.b32.xlu0 %v453, 32
      %v456 = vpop.permute.xlu0 %455
      %v458 = vadd.f32 %v448, %v456
      %v459 = vtanh.pop %v458
      %461 = vrot.lane.b32.xlu0 %v459, 64
      %v462 = vpop.permute.xlu0 %461
      %v464 = vmul.f32 %v441, %v462
      %466 = vrot.lane.b32.xlu0 %v464, 96
      %v467 = vpop.permute.xlu0 %466
      %vm469 = vcmask 785920
      %470 = vst.msk [vmem:[#allocation14] sm:$0xff] %vm469, %v467
      %472 = vrot.lane.b32.xlu0 %v458, 96
      %v473 = vpop.permute.xlu0 %472
      %475 = vst.msk [vmem:[#allocation14 + $0x8] sm:$0xff] %vm123, %v473
      %v476 = vld [vmem:[#allocation11] sm:$0xff]
      %v477 = vld [vmem:[#allocation11 + $0x8] sm:$0xff]
      %v478 = vld [vmem:[#allocation11 + $0x10] sm:$0xff]
      %v479 = vld [vmem:[#allocation11 + $0x18] sm:$0xff]
      %v480 = vld [vmem:[%s8] sm:$0x1]
      %v482 = vlaneseq
      %v483 = vshrl.u32 %v482, 7
      %v484 = vsub.s32 0, %v483
      %v485 = vrot.slane %v480, %v484
      %487 = vrot.lane.b32.xlu0 %v464, 32
      %v488 = vpop.permute.xlu0 %487
      %v489 = vsel %vm123, %v488, 0
      %491 = vmatprep.subr.mxu0 0.0
      %492 = vmatpush1.msra.mxu0 %v476
      %493 = vmatprep.subr.mxu0 0.0
      %494 = vmatpush1.msra.mxu0 %v477
      %495 = vmatprep.subr.mxu0 0.0
      %496 = vmatpush1.msra.mxu0 %v478
      %497 = vmatprep.subr.mxu0 0.0
      %498 = vmatpush1.msra.mxu0 %v479
      %499 = vmatprep.subr.mxu0 0.0
      %500 = vmatpush1.msra.mxu0 0.0
      %501 = vmatprep.subr.mxu0 0.0
      %502 = vmatpush1.msra.mxu0 0.0
      %503 = vmatprep.subr.mxu0 0.0
      %504 = vmatpush1.msra.mxu0 0.0
      %505 = vmatprep.subr.mxu0 0.0
      %506 = vmatpush1.msra.mxu0 0.0
      %507 = vmatprep.subr.mxu0 0.0
      %508 = vmatpush1.msra.mxu0 0.0
      %509 = vmatprep.subr.mxu0 0.0
      %510 = vmatpush1.msra.mxu0 0.0
      %511 = vmatprep.subr.mxu0 0.0
      %512 = vmatpush1.msra.mxu0 0.0
      %513 = vmatprep.subr.mxu0 0.0
      %514 = vmatpush1.msra.mxu0 0.0
      %515 = vmatprep.subr.mxu0 0.0
      %516 = vmatpush1.msra.mxu0 0.0
      %517 = vmatprep.subr.mxu0 0.0
      %518 = vmatpush1.msra.mxu0 0.0
      %519 = vmatprep.subr.mxu0 0.0
      %520 = vmatpush1.msra.mxu0 0.0
      %521 = vmatprep.subr.mxu0 0.0
      %522 = vmatpush1.msra.mxu0 0.0
      %523 = vmatprep.subr.mxu0 0.0
      %524 = vmatpush1.msra.mxu0 0.0
      %525 = vmatprep.subr.mxu0 0.0
      %526 = vmatpush1.msra.mxu0 0.0
      %527 = vmatprep.subr.mxu0 0.0
      %528 = vmatpush1.msra.mxu0 0.0
      %529 = vmatprep.subr.mxu0 0.0
      %530 = vmatpush1.msra.mxu0 0.0
      %531 = vmatprep.subr.mxu0 0.0
      %532 = vmatpush1.msra.mxu0 0.0
      %533 = vmatprep.subr.mxu0 0.0
      %534 = vmatpush1.msra.mxu0 0.0
      %535 = vmatprep.subr.mxu0 0.0
      %536 = vmatpush1.msra.mxu0 0.0
      %537 = vmatprep.subr.mxu0 0.0
      %538 = vmatpush1.msra.mxu0 0.0
      %539 = vmatprep.subr.mxu0 0.0
      %540 = vmatpush1.msra.mxu0 0.0
      %541 = vmatprep.subr.mxu0 0.0
      %542 = vmatpush1.msra.mxu0 0.0
      %543 = vmatprep.subr.mxu0 0.0
      %544 = vmatpush1.msra.mxu0 0.0
      %545 = vmatprep.subr.mxu0 0.0
      %546 = vmatpush1.msra.mxu0 0.0
      %547 = vmatprep.subr.mxu0 0.0
      %548 = vmatpush1.msra.mxu0 0.0
      %549 = vmatprep.subr.mxu0 0.0
      %550 = vmatpush1.msra.mxu0 0.0
      %551 = vmatprep.subr.mxu0 0.0
      %552 = vmatpush1.msra.mxu0 0.0
      %553 = vmatprep.subr.mxu0 0.0
      %554 = vmatpush1.msra.mxu0 0.0
      %555 = vmatprep.mubr.f32.mxu0 0.0
      %556 = vmatmul.mubr.f32.gmra.mrb[0].mxu0 %v489
      %v557 = vpop.f32.mrb[0].mxu0
      %v558 = vadd.f32 %v485, %v557
      %v559 = vpop.f32.mrb[0].mxu0
      %560 = vdwg.mxu0
      %vm561 = vcmp.gt.f32.partialorder %v558, 20.0
      %v562 = vmin.f32 %v558, 20.0
      %v563 = vmul.f32 %v562, 1.442695
      %v564 = vpow.pop %v563
      %v565 = vadd.f32 %v564, 1.0
      %v566 = vlog2.pop %v565
      %v567 = vmul.f32 %v566, 0.6931472
      %v568 = vmul.f32 -0.5, %v564
      %v569 = vadd.f32 %v568, 1.0
      %v570 = vmul.f32 %v569, %v564
      %v571 = vand.u32 2147483647, %v564
      %vm572 = vcmp.lt.f32.partialorder %v571, 0.0004427343
      %v573 = vsel %vm572, %v570, %v567
      %v574 = vsel %vm561, %v558, %v573
      %s575 = scalar_lea.vmem [#allocation5], %s131
      %v576 = vld [vmem:[%s575] sm:$0xff]
      %v577 = vmul.f32 %v574, 0.5
      %v578 = vmul.f32 %v577, 1.442695
      %v579 = vpow.pop %v578
      %581 = vrot.lane.b32.xlu0 %v579, 112
      %v582 = vpop.permute.xlu0 %581
      %v584 = vmul.f32 %v576, %v582
      %v585 = vadd.f32 %v584, %v558
      %s586 = smul.u32 %s126, 24
      %s587 = scalar_lea.vmem [#allocation13], %s586
      %588 = vst.msk [vmem:[%s587] sm:$0xff] %vm143, %v585
      %s589 = sadd.s32 8, %s586
      %s590 = scalar_lea.vmem [#allocation13], %s589
      %591 = vst.msk [vmem:[%s590] sm:$0xff] %vm143, %v558
      %593 = vrot.lane.b32.xlu0 %v574, 112
      %v594 = vpop.permute.xlu0 %593
      %s596 = sadd.s32 16, %s586
      %s597 = scalar_lea.vmem [#allocation13], %s596
      %598 = vst.msk [vmem:[%s597] sm:$0xff] %vm143, %v594
    $region66: #{tpu_custom_call.1} parent=1 // loop_footer
      %s130 = sadd.s32 1, %s126
    $region67: #{tpu_custom_call.1} parent=1 // loop_footer_branch
      %125 = sbr.rel target = $region63
    $region68: #{tpu_custom_call.1} parent=1 // loop_exit
      _
    // Predicated region
    $region69: #{tpu_custom_call.1} parent=1 // pred_check
      _
    $region70: #{tpu_custom_call.1} parent=1 // pred_check_branch
      %600 = sbr.rel (0) target = $region72
    $region71: #{tpu_custom_call.1} parent=1 // pred_region
      %s602 = ssub.s32 3072, 3072
      %603 = vsyncadd [#allocation4], %s602
      %s604 = sshll.u32 [#allocation13], 4
      %s605 = int_to_ptr.vmem [resolvable:$true] %s604
      %610 = dma.vmem_to_hbm [thread:$0]  %s605, 3072, %s9, [#allocation4], 128, 128, 8
    $region72: #{tpu_custom_call.1} parent=1 // pred_fallthru
      _
    // Predicated region
    $region73: #{tpu_custom_call.1} parent=1 // pred_check
      _
    $region74: #{tpu_custom_call.1} parent=1 // pred_check_branch
      %612 = sbr.rel (0) target = $region76
    $region75: #{tpu_custom_call.1} parent=1 // pred_region
      %s614 = ssub.s32 256, 256
      %615 = vsyncadd [#allocation15], %s614
      %s617 = sshll.u32 [#allocation14], 4
      %s618 = int_to_ptr.vmem [resolvable:$true] %s617
      %620 = dma.vmem_to_hbm [thread:$0]  %s618, 256, %s10, [#allocation15]
    $region76: #{tpu_custom_call.1} parent=1 // pred_fallthru
      _
    // Predicated region
    $region77: #{tpu_custom_call.1} parent=1 // pred_check
      _
    $region78: #{tpu_custom_call.1} parent=1 // pred_check_branch
      %622 = sbr.rel (0) target = $region80
    $region79: #{tpu_custom_call.1} parent=1 // pred_region
      %623 = dma.done [#allocation4], 3072
    $region80: #{tpu_custom_call.1} parent=1 // pred_fallthru
      _
    // Predicated region
    $region81: #{tpu_custom_call.1} parent=1 // pred_check
      _
    $region82: #{tpu_custom_call.1} parent=1 // pred_check_branch
      %625 = sbr.rel (0) target = $region84
    $region83: #{tpu_custom_call.1} parent=1 // pred_region
      %626 = dma.done [#allocation15], 256
    $region84: #{tpu_custom_call.1} parent=1 // pred_fallthru
      _
    %627 = vsyncpa [#allocation3], 1
    %628 = vsyncpa [#allocation6], 1
    %629 = vsyncpa [#allocation9], 1
    %630 = vsyncpa [#allocation12], 1
    %631 = vsyncpa [#allocation4], 1
    %632 = vsyncpa [#allocation15], 1

</llo_original>
